<compile_context>
chip_gen: v7x
topology: tpu7x:2x2x1
jax: 0.10.0
libtpu: 0.0.40
codegen_flags: <defaults>
</compile_context>

<pallas_src>
import functools

import jax
import jax.numpy as jnp
from jax.experimental import pallas as pl
from jax.experimental.pallas import tpu as pltpu


# ----------------------------------------------------------------------------
# Fused kernel: one-hot embedding matmul + wavefront-packed L-layer ReLU RNN
# + lane-dense classifier.  Activation rows are time-major: row r = t*B + b.
# ----------------------------------------------------------------------------
def _fused_forward_kernel(ids_ref, emb_ref, wbig_ref, bcat_ref,
                          wcls_ref, bcls_ref, o_ref,
                          *, T, B, Vpad, D, H, L):
    f32 = jnp.float32
    TB = T * B

    # ---- 1. Embedding gather as ONE one-hot matmul (no scalar loop) ----
    ids = ids_ref[...]                                        # (TB, 1) int32
    vocab_iota = jax.lax.broadcasted_iota(jnp.int32, (TB, Vpad), 1)
    one_hot = (ids == vocab_iota).astype(f32)                 # (TB, Vpad)
    x_slab = jnp.dot(one_hot, emb_ref[...],
                     preferred_element_type=f32)              # (TB, D)

    # ---- 2. Wavefront-packed L-layer ReLU RNN ----
    # State vector hcat = [h_0 | h_1 | ... | h_{L-1}] (B, L*H).
    # At wavefront step s, layer l computes h_l(s - l); all active layers are
    # advanced by a single matmul v @ W_big with v = [x_s | hcat].
    wbig = wbig_ref[...]                                      # (D+L*H, L*H)
    bcat = bcat_ref[...]                                      # (1, L*H)
    col = jax.lax.broadcasted_iota(jnp.int32, (1, L * H), 1)
    zeros_x = jnp.zeros((B, D), f32)
    hcat = jnp.zeros((B, L * H), f32)

    top_outs = []
    for s in range(T + L - 1):                                # 10 serial steps
        x_s = x_slab[s * B:(s + 1) * B, :] if s < T else zeros_x
        v = jnp.concatenate([x_s, hcat], axis=1)              # (B, D + L*H)
        out = jnp.maximum(
            jnp.dot(v, wbig, preferred_element_type=f32) + bcat, 0.0)
        if s < L - 1:
            # Layers that have not started yet must keep their zero initial
            # state (their slice of `out` would be relu(bias) garbage).
            hcat = jnp.where(col < (s + 1) * H, out, 0.0)
        else:
            hcat = out
            top_outs.append(out[:, (L - 1) * H:L * H])        # h_{L-1}(s-L+1)

    top = jnp.concatenate(top_outs, axis=0)                   # (T*B, H)

    # ---- 3. Classifier: one (T*B, H) @ (H, 128) lane-dense matmul ----
    o_ref[...] = (jnp.dot(top, wcls_ref[...],
                          preferred_element_type=f32) + bcls_ref[...])


def forward(params, x_ids):
    """x_ids: (B, T) int32 token ids -> (B, T, 2) float32 logits."""
    B, T = x_ids.shape
    emb = params["embedding"]
    Vp1, D = emb.shape
    rnn = params["rnn"]
    L = len(rnn)
    H = rnn[0][1].shape[0]
    wc, bc = params["w_cls"], params["b_cls"]
    C = wc.shape[1]

    # Pad vocab dim to a lane multiple so the one-hot matmul is fully aligned.
    Vpad = max(128, ((Vp1 + 127) // 128) * 128)
    emb_pad = jnp.zeros((Vpad, D), jnp.float32).at[:Vp1, :].set(emb)

    # Block-structured wavefront weight (built once, outside the kernel):
    # v = [x_t | h_0 | ... | h_{L-1}]; column block l produces layer l's new h.
    w_big = jnp.zeros((D + L * H, L * H), jnp.float32)
    b_parts = []
    for l, (w_ih, w_hh, b) in enumerate(rnn):
        cols = slice(l * H, (l + 1) * H)
        rows_in = slice(0, D) if l == 0 else slice(D + (l - 1) * H, D + l * H)
        w_big = w_big.at[rows_in, cols].set(w_ih)             # input proj
        w_big = w_big.at[D + l * H:D + (l + 1) * H, cols].set(w_hh)  # recur
        b_parts.append(b)
    b_cat = jnp.concatenate(b_parts, axis=1)                  # (1, L*H)

    # Lane-dense classifier: pad the 2 output logits out to 128 lanes.
    CP = 128
    wc_pad = jnp.zeros((H, CP), jnp.float32).at[:, :C].set(wc)
    bc_pad = jnp.zeros((1, CP), jnp.float32).at[:, :C].set(bc)

    # Time-major flat ids: row r = t * B + b.
    ids2d = x_ids.T.reshape(T * B, 1).astype(jnp.int32)

    kernel = functools.partial(_fused_forward_kernel,
                               T=T, B=B, Vpad=Vpad, D=D, H=H, L=L)

    def fs(shape):
        nd = len(shape)
        return pl.BlockSpec(shape, lambda i, _nd=nd: (0,) * _nd)

    out_flat = pl.pallas_call(
        kernel,
        out_shape=jax.ShapeDtypeStruct((T * B, CP), jnp.float32),
        grid=(1,),                     # fully fused; working set < 100 KB VMEM
        in_specs=[fs(ids2d.shape), fs(emb_pad.shape), fs(w_big.shape),
                  fs(b_cat.shape), fs(wc_pad.shape), fs(bc_pad.shape)],
        out_specs=fs((T * B, CP)),
        compiler_params=pltpu.CompilerParams(
            dimension_semantics=("arbitrary",)),
    )(ids2d, emb_pad, w_big, b_cat, wc_pad, bc_pad)

    # Back to PyTorch batch_first layout (B, T, C); rows were (t, b) ordered.
    return out_flat[:, :C].reshape(T, B, C).transpose(1, 0, 2)


# ----------------------------------------------------------------------------
# Parameter construction (deterministic, PyTorch-shaped)
# ----------------------------------------------------------------------------
def init_params(key, vocab_size, input_dim, hidden_size, num_rnn_layers):
    keys = jax.random.split(key, 3 + 4 * num_rnn_layers)
    params = {}
    # nn.Embedding(len(vocab)+1, input_dim)
    params["embedding"] = jax.random.normal(
        keys[0], (vocab_size + 1, input_dim), jnp.float32)

    # nn.RNN(input_dim, hidden_size, num_layers, relu), weights stored
    # pre-transposed for x @ W form; biases combined (b_ih + b_hh).
    bound = 1.0 / jnp.sqrt(hidden_size)
    rnn = []
    for l in range(num_rnn_layers):
        d_in = input_dim if l == 0 else hidden_size
        k = keys[3 + 4 * l: 3 + 4 * (l + 1)]
        w_ih = jax.random.uniform(k[0], (d_in, hidden_size), jnp.float32,
                                  -bound, bound)
        w_hh = jax.random.uniform(k[1], (hidden_size, hidden_size), jnp.float32,
                                  -bound, bound)
        b_ih = jax.random.uniform(k[2], (hidden_size,), jnp.float32, -bound, bound)
        b_hh = jax.random.uniform(k[3], (hidden_size,), jnp.float32, -bound, bound)
        rnn.append((w_ih, w_hh, (b_ih + b_hh).reshape(1, hidden_size)))
    params["rnn"] = rnn

    # nn.Linear(hidden_size, 2), stored transposed as (H, 2)
    params["w_cls"] = jax.random.uniform(keys[1], (hidden_size, 2), jnp.float32,
                                         -bound, bound)
    params["b_cls"] = jax.random.uniform(keys[2], (1, 2), jnp.float32,
                                         -bound, bound)
    return params


# ----------------------------------------------------------------------------
# Pure-JAX reference (for correctness check)
# ----------------------------------------------------------------------------
def ref_forward(params, x_ids):
    emb = params["embedding"][x_ids]
    h_seq = jnp.transpose(emb, (1, 0, 2))
    T, B, _ = h_seq.shape
    for (w_ih, w_hh, b) in params["rnn"]:
        H = w_hh.shape[0]
        h = jnp.zeros((B, H), jnp.float32)
        outs = []
        for t in range(T):
            h = jnp.maximum(h_seq[t] @ w_ih + h @ w_hh + b, 0.0)
            outs.append(h)
        h_seq = jnp.stack(outs, axis=0)
    logits = h_seq @ params["w_cls"] + params["b_cls"]
    return jnp.transpose(logits, (1, 0, 2))


if __name__ == "__main__":
    key = jax.random.PRNGKey(0)
    k_param, k_x = jax.random.split(key)

    vocab_size = 10          # len(vocab)
    input_dim = 32
    hidden_size = 32
    num_rnn_layers = 3
    B, T = 2, 8

    params = init_params(k_param, vocab_size, input_dim, hidden_size,
                         num_rnn_layers)
    x_ids = jax.random.randint(k_x, (B, T), 0, vocab_size + 1, dtype=jnp.int32)

    y_pred = forward(params, x_ids)
    jax.block_until_ready(y_pred)

    y_ref = ref_forward(params, x_ids)
    assert y_pred.shape == (B, T, 2)
    max_err = jnp.max(jnp.abs(y_pred - y_ref))
    assert jnp.allclose(y_pred, y_ref, atol=1e-4, rtol=1e-4), (
        f"max err {max_err}")

    print("KERNEL_OK")
</pallas_src>

<mosaic_0001>
module attributes {stable_mosaic.version = 11 : i64} {
  func.func @_fused_forward_kernel(%arg0: i32, %arg1: memref<16x1xi32, #tpu.memory_space<vmem>>, %arg2: memref<128x32xf32, #tpu.memory_space<vmem>>, %arg3: memref<128x96xf32, #tpu.memory_space<vmem>>, %arg4: memref<1x96xf32, #tpu.memory_space<vmem>>, %arg5: memref<32x128xf32, #tpu.memory_space<vmem>>, %arg6: memref<1x128xf32, #tpu.memory_space<vmem>>, %arg7: memref<16x128xf32, #tpu.memory_space<vmem>>) attributes {dimension_semantics = [#tpu.dimension_semantics<arbitrary>], iteration_bounds = array<i64: 1>, scalar_prefetch = 0 : i64, scratch_operands = 0 : i64, tpu.core_type = #tpu.core_type<tc>, window_params = [{pipeline_mode = #tpu.pipeline_mode<synchronous>, transform_indices = @transform_0, window_bounds = array<i64: 16, 1>}, {pipeline_mode = #tpu.pipeline_mode<synchronous>, transform_indices = @transform_1, window_bounds = array<i64: 128, 32>}, {pipeline_mode = #tpu.pipeline_mode<synchronous>, transform_indices = @transform_2, window_bounds = array<i64: 128, 96>}, {pipeline_mode = #tpu.pipeline_mode<synchronous>, transform_indices = @transform_3, window_bounds = array<i64: 1, 96>}, {pipeline_mode = #tpu.pipeline_mode<synchronous>, transform_indices = @transform_4, window_bounds = array<i64: 32, 128>}, {pipeline_mode = #tpu.pipeline_mode<synchronous>, transform_indices = @transform_5, window_bounds = array<i64: 1, 128>}, {pipeline_mode = #tpu.pipeline_mode<synchronous>, transform_indices = @transform_6, window_bounds = array<i64: 16, 128>}]} {
    %c0 = arith.constant 0 : index
    %c0_0 = arith.constant 0 : index
    %0 = vector.load %arg1[%c0, %c0_0] : memref<16x1xi32, #tpu.memory_space<vmem>>, vector<16x1xi32>
    %1 = tpu.iota {dimensions = array<i32: 1>} : vector<16x128xi32>
    %2 = vector.broadcast %0 : vector<16x1xi32> to vector<16x128xi32>
    %3 = arith.cmpi eq, %2, %1 : vector<16x128xi32>
    %4 = arith.extui %3 : vector<16x128xi1> to vector<16x128xi32>
    %5 = arith.sitofp %4 : vector<16x128xi32> to vector<16x128xf32>
    %c0_1 = arith.constant 0 : index
    %c0_2 = arith.constant 0 : index
    %6 = vector.load %arg2[%c0_1, %c0_2] : memref<128x32xf32, #tpu.memory_space<vmem>>, vector<128x32xf32>
    %cst = arith.constant dense<0.000000e+00> : vector<16x32xf32>
    %7 = tpu.matmul %5, %6, %cst {dimension_numbers = #tpu.dot_dimension_numbers<[1], [0], [0], [1], [0, 0, 1, 1], [], []>} : vector<16x128xf32>, vector<128x32xf32>, vector<16x32xf32> -> vector<16x32xf32>
    %c0_3 = arith.constant 0 : index
    %c0_4 = arith.constant 0 : index
    %8 = vector.load %arg3[%c0_3, %c0_4] : memref<128x96xf32, #tpu.memory_space<vmem>>, vector<128x96xf32>
    %c0_5 = arith.constant 0 : index
    %c0_6 = arith.constant 0 : index
    %9 = vector.load %arg4[%c0_5, %c0_6] : memref<1x96xf32, #tpu.memory_space<vmem>>, vector<1x96xf32>
    %10 = tpu.iota {dimensions = array<i32: 1>} : vector<1x96xi32>
    %cst_7 = arith.constant 0.000000e+00 : f32
    %11 = vector.broadcast %cst_7 : f32 to vector<2x32xf32>
    %cst_8 = arith.constant 0.000000e+00 : f32
    %12 = vector.broadcast %cst_8 : f32 to vector<2x96xf32>
    %13 = vector.extract_strided_slice %7 {offsets = [0, 0], sizes = [2, 32], strides = [1, 1]} : vector<16x32xf32> to vector<2x32xf32>
    %14 = tpu.concatenate %13, %12 in 1 : vector<2x32xf32>, vector<2x96xf32> -> vector<2x128xf32>
    %cst_9 = arith.constant dense<0.000000e+00> : vector<2x96xf32>
    %15 = tpu.matmul %14, %8, %cst_9 {dimension_numbers = #tpu.dot_dimension_numbers<[1], [0], [0], [1], [0, 0, 1, 1], [], []>} : vector<2x128xf32>, vector<128x96xf32>, vector<2x96xf32> -> vector<2x96xf32>
    %16 = vector.broadcast %9 : vector<1x96xf32> to vector<2x96xf32>
    %17 = arith.addf %15, %16 : vector<2x96xf32>
    %cst_10 = arith.constant 0.000000e+00 : f32
    %18 = vector.broadcast %cst_10 : f32 to vector<2x96xf32>
    %19 = arith.maximumf %17, %18 : vector<2x96xf32>
    %c32_i32 = arith.constant 32 : i32
    %20 = vector.broadcast %c32_i32 : i32 to vector<1x96xi32>
    %21 = arith.cmpi slt, %10, %20 : vector<1x96xi32>
    %cst_11 = arith.constant 0.000000e+00 : f32
    %22 = vector.shape_cast %21 : vector<1x96xi1> to vector<1x96xi1>
    %23 = vector.broadcast %22 : vector<1x96xi1> to vector<2x96xi1>
    %24 = vector.broadcast %cst_11 : f32 to vector<2x96xf32>
    %25 = arith.select %23, %19, %24 : vector<2x96xi1>, vector<2x96xf32>
    %26 = vector.extract_strided_slice %7 {offsets = [2, 0], sizes = [2, 32], strides = [1, 1]} : vector<16x32xf32> to vector<2x32xf32>
    %27 = tpu.concatenate %26, %25 in 1 : vector<2x32xf32>, vector<2x96xf32> -> vector<2x128xf32>
    %cst_12 = arith.constant dense<0.000000e+00> : vector<2x96xf32>
    %28 = tpu.matmul %27, %8, %cst_12 {dimension_numbers = #tpu.dot_dimension_numbers<[1], [0], [0], [1], [0, 0, 1, 1], [], []>} : vector<2x128xf32>, vector<128x96xf32>, vector<2x96xf32> -> vector<2x96xf32>
    %29 = vector.broadcast %9 : vector<1x96xf32> to vector<2x96xf32>
    %30 = arith.addf %28, %29 : vector<2x96xf32>
    %cst_13 = arith.constant 0.000000e+00 : f32
    %31 = vector.broadcast %cst_13 : f32 to vector<2x96xf32>
    %32 = arith.maximumf %30, %31 : vector<2x96xf32>
    %c64_i32 = arith.constant 64 : i32
    %33 = vector.broadcast %c64_i32 : i32 to vector<1x96xi32>
    %34 = arith.cmpi slt, %10, %33 : vector<1x96xi32>
    %cst_14 = arith.constant 0.000000e+00 : f32
    %35 = vector.shape_cast %34 : vector<1x96xi1> to vector<1x96xi1>
    %36 = vector.broadcast %35 : vector<1x96xi1> to vector<2x96xi1>
    %37 = vector.broadcast %cst_14 : f32 to vector<2x96xf32>
    %38 = arith.select %36, %32, %37 : vector<2x96xi1>, vector<2x96xf32>
    %39 = vector.extract_strided_slice %7 {offsets = [4, 0], sizes = [2, 32], strides = [1, 1]} : vector<16x32xf32> to vector<2x32xf32>
    %40 = tpu.concatenate %39, %38 in 1 : vector<2x32xf32>, vector<2x96xf32> -> vector<2x128xf32>
    %cst_15 = arith.constant dense<0.000000e+00> : vector<2x96xf32>
    %41 = tpu.matmul %40, %8, %cst_15 {dimension_numbers = #tpu.dot_dimension_numbers<[1], [0], [0], [1], [0, 0, 1, 1], [], []>} : vector<2x128xf32>, vector<128x96xf32>, vector<2x96xf32> -> vector<2x96xf32>
    %42 = vector.broadcast %9 : vector<1x96xf32> to vector<2x96xf32>
    %43 = arith.addf %41, %42 : vector<2x96xf32>
    %cst_16 = arith.constant 0.000000e+00 : f32
    %44 = vector.broadcast %cst_16 : f32 to vector<2x96xf32>
    %45 = arith.maximumf %43, %44 : vector<2x96xf32>
    %46 = vector.extract_strided_slice %45 {offsets = [0, 64], sizes = [2, 32], strides = [1, 1]} : vector<2x96xf32> to vector<2x32xf32>
    %47 = vector.extract_strided_slice %7 {offsets = [6, 0], sizes = [2, 32], strides = [1, 1]} : vector<16x32xf32> to vector<2x32xf32>
    %48 = tpu.concatenate %47, %45 in 1 : vector<2x32xf32>, vector<2x96xf32> -> vector<2x128xf32>
    %cst_17 = arith.constant dense<0.000000e+00> : vector<2x96xf32>
    %49 = tpu.matmul %48, %8, %cst_17 {dimension_numbers = #tpu.dot_dimension_numbers<[1], [0], [0], [1], [0, 0, 1, 1], [], []>} : vector<2x128xf32>, vector<128x96xf32>, vector<2x96xf32> -> vector<2x96xf32>
    %50 = vector.broadcast %9 : vector<1x96xf32> to vector<2x96xf32>
    %51 = arith.addf %49, %50 : vector<2x96xf32>
    %cst_18 = arith.constant 0.000000e+00 : f32
    %52 = vector.broadcast %cst_18 : f32 to vector<2x96xf32>
    %53 = arith.maximumf %51, %52 : vector<2x96xf32>
    %54 = vector.extract_strided_slice %53 {offsets = [0, 64], sizes = [2, 32], strides = [1, 1]} : vector<2x96xf32> to vector<2x32xf32>
    %55 = vector.extract_strided_slice %7 {offsets = [8, 0], sizes = [2, 32], strides = [1, 1]} : vector<16x32xf32> to vector<2x32xf32>
    %56 = tpu.concatenate %55, %53 in 1 : vector<2x32xf32>, vector<2x96xf32> -> vector<2x128xf32>
    %cst_19 = arith.constant dense<0.000000e+00> : vector<2x96xf32>
    %57 = tpu.matmul %56, %8, %cst_19 {dimension_numbers = #tpu.dot_dimension_numbers<[1], [0], [0], [1], [0, 0, 1, 1], [], []>} : vector<2x128xf32>, vector<128x96xf32>, vector<2x96xf32> -> vector<2x96xf32>
    %58 = vector.broadcast %9 : vector<1x96xf32> to vector<2x96xf32>
    %59 = arith.addf %57, %58 : vector<2x96xf32>
    %cst_20 = arith.constant 0.000000e+00 : f32
    %60 = vector.broadcast %cst_20 : f32 to vector<2x96xf32>
    %61 = arith.maximumf %59, %60 : vector<2x96xf32>
    %62 = vector.extract_strided_slice %61 {offsets = [0, 64], sizes = [2, 32], strides = [1, 1]} : vector<2x96xf32> to vector<2x32xf32>
    %63 = vector.extract_strided_slice %7 {offsets = [10, 0], sizes = [2, 32], strides = [1, 1]} : vector<16x32xf32> to vector<2x32xf32>
    %64 = tpu.concatenate %63, %61 in 1 : vector<2x32xf32>, vector<2x96xf32> -> vector<2x128xf32>
    %cst_21 = arith.constant dense<0.000000e+00> : vector<2x96xf32>
    %65 = tpu.matmul %64, %8, %cst_21 {dimension_numbers = #tpu.dot_dimension_numbers<[1], [0], [0], [1], [0, 0, 1, 1], [], []>} : vector<2x128xf32>, vector<128x96xf32>, vector<2x96xf32> -> vector<2x96xf32>
    %66 = vector.broadcast %9 : vector<1x96xf32> to vector<2x96xf32>
    %67 = arith.addf %65, %66 : vector<2x96xf32>
    %cst_22 = arith.constant 0.000000e+00 : f32
    %68 = vector.broadcast %cst_22 : f32 to vector<2x96xf32>
    %69 = arith.maximumf %67, %68 : vector<2x96xf32>
    %70 = vector.extract_strided_slice %69 {offsets = [0, 64], sizes = [2, 32], strides = [1, 1]} : vector<2x96xf32> to vector<2x32xf32>
    %71 = vector.extract_strided_slice %7 {offsets = [12, 0], sizes = [2, 32], strides = [1, 1]} : vector<16x32xf32> to vector<2x32xf32>
    %72 = tpu.concatenate %71, %69 in 1 : vector<2x32xf32>, vector<2x96xf32> -> vector<2x128xf32>
    %cst_23 = arith.constant dense<0.000000e+00> : vector<2x96xf32>
    %73 = tpu.matmul %72, %8, %cst_23 {dimension_numbers = #tpu.dot_dimension_numbers<[1], [0], [0], [1], [0, 0, 1, 1], [], []>} : vector<2x128xf32>, vector<128x96xf32>, vector<2x96xf32> -> vector<2x96xf32>
    %74 = vector.broadcast %9 : vector<1x96xf32> to vector<2x96xf32>
    %75 = arith.addf %73, %74 : vector<2x96xf32>
    %cst_24 = arith.constant 0.000000e+00 : f32
    %76 = vector.broadcast %cst_24 : f32 to vector<2x96xf32>
    %77 = arith.maximumf %75, %76 : vector<2x96xf32>
    %78 = vector.extract_strided_slice %77 {offsets = [0, 64], sizes = [2, 32], strides = [1, 1]} : vector<2x96xf32> to vector<2x32xf32>
    %79 = vector.extract_strided_slice %7 {offsets = [14, 0], sizes = [2, 32], strides = [1, 1]} : vector<16x32xf32> to vector<2x32xf32>
    %80 = tpu.concatenate %79, %77 in 1 : vector<2x32xf32>, vector<2x96xf32> -> vector<2x128xf32>
    %cst_25 = arith.constant dense<0.000000e+00> : vector<2x96xf32>
    %81 = tpu.matmul %80, %8, %cst_25 {dimension_numbers = #tpu.dot_dimension_numbers<[1], [0], [0], [1], [0, 0, 1, 1], [], []>} : vector<2x128xf32>, vector<128x96xf32>, vector<2x96xf32> -> vector<2x96xf32>
    %82 = vector.broadcast %9 : vector<1x96xf32> to vector<2x96xf32>
    %83 = arith.addf %81, %82 : vector<2x96xf32>
    %cst_26 = arith.constant 0.000000e+00 : f32
    %84 = vector.broadcast %cst_26 : f32 to vector<2x96xf32>
    %85 = arith.maximumf %83, %84 : vector<2x96xf32>
    %86 = vector.extract_strided_slice %85 {offsets = [0, 64], sizes = [2, 32], strides = [1, 1]} : vector<2x96xf32> to vector<2x32xf32>
    %87 = tpu.concatenate %11, %85 in 1 : vector<2x32xf32>, vector<2x96xf32> -> vector<2x128xf32>
    %cst_27 = arith.constant dense<0.000000e+00> : vector<2x96xf32>
    %88 = tpu.matmul %87, %8, %cst_27 {dimension_numbers = #tpu.dot_dimension_numbers<[1], [0], [0], [1], [0, 0, 1, 1], [], []>} : vector<2x128xf32>, vector<128x96xf32>, vector<2x96xf32> -> vector<2x96xf32>
    %89 = vector.broadcast %9 : vector<1x96xf32> to vector<2x96xf32>
    %90 = arith.addf %88, %89 : vector<2x96xf32>
    %cst_28 = arith.constant 0.000000e+00 : f32
    %91 = vector.broadcast %cst_28 : f32 to vector<2x96xf32>
    %92 = arith.maximumf %90, %91 : vector<2x96xf32>
    %93 = vector.extract_strided_slice %92 {offsets = [0, 64], sizes = [2, 32], strides = [1, 1]} : vector<2x96xf32> to vector<2x32xf32>
    %94 = tpu.concatenate %11, %92 in 1 : vector<2x32xf32>, vector<2x96xf32> -> vector<2x128xf32>
    %cst_29 = arith.constant dense<0.000000e+00> : vector<2x96xf32>
    %95 = tpu.matmul %94, %8, %cst_29 {dimension_numbers = #tpu.dot_dimension_numbers<[1], [0], [0], [1], [0, 0, 1, 1], [], []>} : vector<2x128xf32>, vector<128x96xf32>, vector<2x96xf32> -> vector<2x96xf32>
    %96 = vector.broadcast %9 : vector<1x96xf32> to vector<2x96xf32>
    %97 = arith.addf %95, %96 : vector<2x96xf32>
    %cst_30 = arith.constant 0.000000e+00 : f32
    %98 = vector.broadcast %cst_30 : f32 to vector<2x96xf32>
    %99 = arith.maximumf %97, %98 : vector<2x96xf32>
    %100 = vector.extract_strided_slice %99 {offsets = [0, 64], sizes = [2, 32], strides = [1, 1]} : vector<2x96xf32> to vector<2x32xf32>
    %101 = tpu.concatenate %46, %54, %62, %70, %78, %86, %93, %100 in 0 : vector<2x32xf32>, vector<2x32xf32>, vector<2x32xf32>, vector<2x32xf32>, vector<2x32xf32>, vector<2x32xf32>, vector<2x32xf32>, vector<2x32xf32> -> vector<16x32xf32>
    %c0_31 = arith.constant 0 : index
    %c0_32 = arith.constant 0 : index
    %102 = vector.load %arg5[%c0_31, %c0_32] : memref<32x128xf32, #tpu.memory_space<vmem>>, vector<32x128xf32>
    %cst_33 = arith.constant dense<0.000000e+00> : vector<16x128xf32>
    %103 = tpu.matmul %101, %102, %cst_33 {dimension_numbers = #tpu.dot_dimension_numbers<[1], [0], [0], [1], [0, 0, 1, 1], [], []>} : vector<16x32xf32>, vector<32x128xf32>, vector<16x128xf32> -> vector<16x128xf32>
    %c0_34 = arith.constant 0 : index
    %c0_35 = arith.constant 0 : index
    %104 = vector.load %arg6[%c0_34, %c0_35] : memref<1x128xf32, #tpu.memory_space<vmem>>, vector<1x128xf32>
    %105 = vector.broadcast %104 : vector<1x128xf32> to vector<16x128xf32>
    %106 = arith.addf %103, %105 : vector<16x128xf32>
    %c0_36 = arith.constant 0 : index
    %c0_37 = arith.constant 0 : index
    %107 = vector.load %arg7[%c0_36, %c0_37] : memref<16x128xf32, #tpu.memory_space<vmem>>, vector<16x128xf32>
    tpu.vector_store %arg7[%c0_36, %c0_37], %106 {strides = array<i32>} : memref<16x128xf32, #tpu.memory_space<vmem>>, vector<16x128xf32>,
    return
  }
  func.func @transform_0(%arg0: i32) -> (i32, i32) {
    %c0_i32 = arith.constant 0 : i32
    %c0_i32_0 = arith.constant 0 : i32
    %c0_i32_1 = arith.constant 0 : i32
    return %c0_i32, %c0_i32_0 : i32, i32
  }
  func.func @transform_1(%arg0: i32) -> (i32, i32) {
    %c0_i32 = arith.constant 0 : i32
    %c0_i32_0 = arith.constant 0 : i32
    %c0_i32_1 = arith.constant 0 : i32
    return %c0_i32, %c0_i32_0 : i32, i32
  }
  func.func @transform_2(%arg0: i32) -> (i32, i32) {
    %c0_i32 = arith.constant 0 : i32
    %c0_i32_0 = arith.constant 0 : i32
    %c0_i32_1 = arith.constant 0 : i32
    return %c0_i32, %c0_i32_0 : i32, i32
  }
  func.func @transform_3(%arg0: i32) -> (i32, i32) {
    %c0_i32 = arith.constant 0 : i32
    %c0_i32_0 = arith.constant 0 : i32
    %c0_i32_1 = arith.constant 0 : i32
    return %c0_i32, %c0_i32_0 : i32, i32
  }
  func.func @transform_4(%arg0: i32) -> (i32, i32) {
    %c0_i32 = arith.constant 0 : i32
    %c0_i32_0 = arith.constant 0 : i32
    %c0_i32_1 = arith.constant 0 : i32
    return %c0_i32, %c0_i32_0 : i32, i32
  }
  func.func @transform_5(%arg0: i32) -> (i32, i32) {
    %c0_i32 = arith.constant 0 : i32
    %c0_i32_0 = arith.constant 0 : i32
    %c0_i32_1 = arith.constant 0 : i32
    return %c0_i32, %c0_i32_0 : i32, i32
  }
  func.func @transform_6(%arg0: i32) -> (i32, i32) {
    %c0_i32 = arith.constant 0 : i32
    %c0_i32_0 = arith.constant 0 : i32
    %c0_i32_1 = arith.constant 0 : i32
    return %c0_i32, %c0_i32_0 : i32, i32
  }
}

</mosaic_0001>

<llo_original>
// kernel: tpu_custom_call.1
$region0: #{tpu_custom_call.1}
  #allocation0 [shape = 'u32[]', space=smem, size = 0x4, offset = 0x4, fixed_abs, tag = 'smem constant byte address 0x4 - core index']
  #allocation1 [shape = 'u32[144,128]{1,0:T(1,128)}', space=vmem, size = 0x12000, scoped, tag = 'internal scratch']
  %s0 = inlined_call_operand.vmem [shape: s32[16,1], index: 0, kind: input, shape index: {}]
  %s1 = inlined_call_operand.vmem [shape: f32[128,32], index: 1, kind: input, shape index: {}]
  %s2 = inlined_call_operand.vmem [shape: f32[128,96], index: 2, kind: input, shape index: {}]
  %s3 = inlined_call_operand.vmem [shape: f32[1,96], index: 3, kind: input, shape index: {}]
  %s4 = inlined_call_operand.vmem [shape: f32[32,128], index: 4, kind: input, shape index: {}]
  %s5 = inlined_call_operand.vmem [shape: f32[1,128], index: 5, kind: input, shape index: {}]
  %s6 = inlined_call_operand.hbm [shape: f32[16,128], index: 6, kind: output, shape index: {}]
  %s7 = sld [smem:[#allocation0]]
  $region34: #{tpu_custom_call.1} parent=0
    _
  %s9 = ssub.s32 1, %s7
  %s10 = scalar_select 0, %s9, %s7
  $region1: #{tpu_custom_call.1} parent=0
    #allocation2 [shape = 'u8[8192]{0}', space=vmem, size = 0x2000, scoped, tag = 'output window, operand 0, single buffered']
    #allocation3 [shape = 's32[1]{0}', space=sflag, size = 0x4, scoped, tag = 'scoped memory for tpu_custom_call.1']
    %11 = vsyncpa [#allocation3], 0
    // Predicated region
    $region2: #{tpu_custom_call.1} parent=1 // pred_check
      _
    $region3: #{tpu_custom_call.1} parent=1 // pred_check_branch
      %13 = sbr.rel (0) target = $region5
    $region4: #{tpu_custom_call.1} parent=1 // pred_region
      _
    $region5: #{tpu_custom_call.1} parent=1 // pred_fallthru
      _
    // Predicated region
    $region6: #{tpu_custom_call.1} parent=1 // pred_check
      _
    $region7: #{tpu_custom_call.1} parent=1 // pred_check_branch
      %15 = sbr.rel (0) target = $region9
    $region8: #{tpu_custom_call.1} parent=1 // pred_region
      _
    $region9: #{tpu_custom_call.1} parent=1 // pred_fallthru
      _
    // Predicated region
    $region10: #{tpu_custom_call.1} parent=1 // pred_check
      _
    $region11: #{tpu_custom_call.1} parent=1 // pred_check_branch
      %17 = sbr.rel (0) target = $region13
    $region12: #{tpu_custom_call.1} parent=1 // pred_region
      _
    $region13: #{tpu_custom_call.1} parent=1 // pred_fallthru
      _
    // Predicated region
    $region14: #{tpu_custom_call.1} parent=1 // pred_check
      _
    $region15: #{tpu_custom_call.1} parent=1 // pred_check_branch
      %19 = sbr.rel (0) target = $region17
    $region16: #{tpu_custom_call.1} parent=1 // pred_region
      _
    $region17: #{tpu_custom_call.1} parent=1 // pred_fallthru
      _
    // Predicated region
    $region18: #{tpu_custom_call.1} parent=1 // pred_check
      _
    $region19: #{tpu_custom_call.1} parent=1 // pred_check_branch
      %21 = sbr.rel (0) target = $region21
    $region20: #{tpu_custom_call.1} parent=1 // pred_region
      _
    $region21: #{tpu_custom_call.1} parent=1 // pred_fallthru
      _
    // Predicated region
    $region22: #{tpu_custom_call.1} parent=1 // pred_check
      _
    $region23: #{tpu_custom_call.1} parent=1 // pred_check_branch
      %23 = sbr.rel (0) target = $region25
    $region24: #{tpu_custom_call.1} parent=1 // pred_region
      _
    $region25: #{tpu_custom_call.1} parent=1 // pred_fallthru
      _
    %v24 = vld [vmem:[%s0] sm:$0xff]
    %v25 = vld [vmem:[%s0 + $0x8] sm:$0xff]
    %v26 = vlaneseq
    %v27 = vand.u32 %v26, 127
    %28 = vset.pattern.permute.xlu0 0
    %29 = vperm.xlu0 %28, %v24
    %v30 = vpop.permute.xlu0 %29
    %31 = vset.pattern.permute.xlu0 0
    %32 = vperm.xlu0 %31, %v25
    %v33 = vpop.permute.xlu0 %32
    %vm34 = vcmp.eq.s32.totalorder %v30, %v27
    %vm35 = vcmp.eq.s32.totalorder %v33, %v27
    %v36 = vsel %vm34, 1, 0
    %v37 = vsel %vm35, 1, 0
    %v38 = vcvt.s32.f32 %v36
    %v39 = vcvt.s32.f32 %v37
    %v40 = vld [vmem:[%s1] sm:$0xff]
    %v41 = vld [vmem:[%s1 + $0x8] sm:$0xff]
    %v42 = vld [vmem:[%s1 + $0x10] sm:$0xff]
    %v43 = vld [vmem:[%s1 + $0x18] sm:$0xff]
    %v44 = vld [vmem:[%s1 + $0x20] sm:$0xff]
    %v45 = vld [vmem:[%s1 + $0x28] sm:$0xff]
    %v46 = vld [vmem:[%s1 + $0x30] sm:$0xff]
    %v47 = vld [vmem:[%s1 + $0x38] sm:$0xff]
    %v48 = vld [vmem:[%s1 + $0x40] sm:$0xff]
    %v49 = vld [vmem:[%s1 + $0x48] sm:$0xff]
    %v50 = vld [vmem:[%s1 + $0x50] sm:$0xff]
    %v51 = vld [vmem:[%s1 + $0x58] sm:$0xff]
    %v52 = vld [vmem:[%s1 + $0x60] sm:$0xff]
    %v53 = vld [vmem:[%s1 + $0x68] sm:$0xff]
    %v54 = vld [vmem:[%s1 + $0x70] sm:$0xff]
    %v55 = vld [vmem:[%s1 + $0x78] sm:$0xff]
    %56 = vmatprep.subr.mxu0 0.0
    %57 = vmatpush1.msra.mxu0 %v40
    %58 = vmatprep.subr.mxu0 0.0
    %59 = vmatpush1.msra.mxu0 %v41
    %60 = vmatprep.subr.mxu0 0.0
    %61 = vmatpush1.msra.mxu0 %v42
    %62 = vmatprep.subr.mxu0 0.0
    %63 = vmatpush1.msra.mxu0 %v43
    %64 = vmatprep.subr.mxu0 0.0
    %65 = vmatpush1.msra.mxu0 %v44
    %66 = vmatprep.subr.mxu0 0.0
    %67 = vmatpush1.msra.mxu0 %v45
    %68 = vmatprep.subr.mxu0 0.0
    %69 = vmatpush1.msra.mxu0 %v46
    %70 = vmatprep.subr.mxu0 0.0
    %71 = vmatpush1.msra.mxu0 %v47
    %72 = vmatprep.subr.mxu0 0.0
    %73 = vmatpush1.msra.mxu0 %v48
    %74 = vmatprep.subr.mxu0 0.0
    %75 = vmatpush1.msra.mxu0 %v49
    %76 = vmatprep.subr.mxu0 0.0
    %77 = vmatpush1.msra.mxu0 %v50
    %78 = vmatprep.subr.mxu0 0.0
    %79 = vmatpush1.msra.mxu0 %v51
    %80 = vmatprep.subr.mxu0 0.0
    %81 = vmatpush1.msra.mxu0 %v52
    %82 = vmatprep.subr.mxu0 0.0
    %83 = vmatpush1.msra.mxu0 %v53
    %84 = vmatprep.subr.mxu0 0.0
    %85 = vmatpush1.msra.mxu0 %v54
    %86 = vmatprep.subr.mxu0 0.0
    %87 = vmatpush1.msra.mxu0 %v55
    %88 = vmatprep.subr.mxu0 0.0
    %89 = vmatpush1.msra.mxu0 0.0
    %90 = vmatprep.subr.mxu0 0.0
    %91 = vmatpush1.msra.mxu0 0.0
    %92 = vmatprep.subr.mxu0 0.0
    %93 = vmatpush1.msra.mxu0 0.0
    %94 = vmatprep.subr.mxu0 0.0
    %95 = vmatpush1.msra.mxu0 0.0
    %96 = vmatprep.subr.mxu0 0.0
    %97 = vmatpush1.msra.mxu0 0.0
    %98 = vmatprep.subr.mxu0 0.0
    %99 = vmatpush1.msra.mxu0 0.0
    %100 = vmatprep.subr.mxu0 0.0
    %101 = vmatpush1.msra.mxu0 0.0
    %102 = vmatprep.subr.mxu0 0.0
    %103 = vmatpush1.msra.mxu0 0.0
    %104 = vmatprep.subr.mxu0 0.0
    %105 = vmatpush1.msra.mxu0 0.0
    %106 = vmatprep.subr.mxu0 0.0
    %107 = vmatpush1.msra.mxu0 0.0
    %108 = vmatprep.subr.mxu0 0.0
    %109 = vmatpush1.msra.mxu0 0.0
    %110 = vmatprep.subr.mxu0 0.0
    %111 = vmatpush1.msra.mxu0 0.0
    %112 = vmatprep.subr.mxu0 0.0
    %113 = vmatpush1.msra.mxu0 0.0
    %114 = vmatprep.subr.mxu0 0.0
    %115 = vmatpush1.msra.mxu0 0.0
    %116 = vmatprep.subr.mxu0 0.0
    %117 = vmatpush1.msra.mxu0 0.0
    %118 = vmatprep.subr.mxu0 0.0
    %119 = vmatpush1.msra.mxu0 0.0
    %120 = vmatprep.mubr.f32.mxu0 0.0
    %121 = vmatmul.mubr.f32.gmra.mrb[0].mxu0 %v38
    %v122 = vpop.f32.mrb[0].mxu0
    %v123 = vadd.f32 0.0, %v122
    %v124 = vpop.f32.mrb[0].mxu0
    %125 = vmatprep.mubr.f32.mxu0 0.0
    %126 = vmatmul.mubr.f32.gmra.mrb[0].mxu0 %v39
    %v127 = vpop.f32.mrb[0].mxu0
    %v128 = vadd.f32 0.0, %v127
    %v129 = vpop.f32.mrb[0].mxu0
    %130 = vdwg.mxu0
    %v131 = vld [vmem:[%s2] sm:$0xff]
    %v132 = vld [vmem:[%s2 + $0x8] sm:$0xff]
    %v133 = vld [vmem:[%s2 + $0x10] sm:$0xff]
    %v134 = vld [vmem:[%s2 + $0x18] sm:$0xff]
    %v135 = vld [vmem:[%s2 + $0x20] sm:$0xff]
    %v136 = vld [vmem:[%s2 + $0x28] sm:$0xff]
    %v137 = vld [vmem:[%s2 + $0x30] sm:$0xff]
    %v138 = vld [vmem:[%s2 + $0x38] sm:$0xff]
    %v139 = vld [vmem:[%s2 + $0x40] sm:$0xff]
    %v140 = vld [vmem:[%s2 + $0x48] sm:$0xff]
    %v141 = vld [vmem:[%s2 + $0x50] sm:$0xff]
    %v142 = vld [vmem:[%s2 + $0x58] sm:$0xff]
    %v143 = vld [vmem:[%s2 + $0x60] sm:$0xff]
    %v144 = vld [vmem:[%s2 + $0x68] sm:$0xff]
    %v145 = vld [vmem:[%s2 + $0x70] sm:$0xff]
    %v146 = vld [vmem:[%s2 + $0x78] sm:$0xff]
    %v147 = vld [vmem:[%s3] sm:$0x1]
    %vm148 = vcmask 261120
    %v149 = vsel %vm148, %v123, 0.0
    %v151 = vlaneseq
    %v152 = vshrl.u32 %v151, 7
    %v153 = vsub.s32 0, %v152
    %v154 = vrot.slane %v147, %v153
    %156 = vmatprep.subr.mxu0 0.0
    %157 = vmatpush1.msra.mxu0 %v131
    %158 = vmatprep.subr.mxu0 0.0
    %159 = vmatpush1.msra.mxu0 %v132
    %160 = vmatprep.subr.mxu0 0.0
    %161 = vmatpush1.msra.mxu0 %v133
    %162 = vmatprep.subr.mxu0 0.0
    %163 = vmatpush1.msra.mxu0 %v134
    %164 = vmatprep.subr.mxu0 0.0
    %165 = vmatpush1.msra.mxu0 %v135
    %166 = vmatprep.subr.mxu0 0.0
    %167 = vmatpush1.msra.mxu0 %v136
    %168 = vmatprep.subr.mxu0 0.0
    %169 = vmatpush1.msra.mxu0 %v137
    %170 = vmatprep.subr.mxu0 0.0
    %171 = vmatpush1.msra.mxu0 %v138
    %172 = vmatprep.subr.mxu0 0.0
    %173 = vmatpush1.msra.mxu0 %v139
    %174 = vmatprep.subr.mxu0 0.0
    %175 = vmatpush1.msra.mxu0 %v140
    %176 = vmatprep.subr.mxu0 0.0
    %177 = vmatpush1.msra.mxu0 %v141
    %178 = vmatprep.subr.mxu0 0.0
    %179 = vmatpush1.msra.mxu0 %v142
    %180 = vmatprep.subr.mxu0 0.0
    %181 = vmatpush1.msra.mxu0 %v143
    %182 = vmatprep.subr.mxu0 0.0
    %183 = vmatpush1.msra.mxu0 %v144
    %184 = vmatprep.subr.mxu0 0.0
    %185 = vmatpush1.msra.mxu0 %v145
    %186 = vmatprep.subr.mxu0 0.0
    %187 = vmatpush1.msra.mxu0 %v146
    %188 = vmatprep.subr.mxu0 0.0
    %189 = vmatpush1.msra.mxu0 0.0
    %190 = vmatprep.subr.mxu0 0.0
    %191 = vmatpush1.msra.mxu0 0.0
    %192 = vmatprep.subr.mxu0 0.0
    %193 = vmatpush1.msra.mxu0 0.0
    %194 = vmatprep.subr.mxu0 0.0
    %195 = vmatpush1.msra.mxu0 0.0
    %196 = vmatprep.subr.mxu0 0.0
    %197 = vmatpush1.msra.mxu0 0.0
    %198 = vmatprep.subr.mxu0 0.0
    %199 = vmatpush1.msra.mxu0 0.0
    %200 = vmatprep.subr.mxu0 0.0
    %201 = vmatpush1.msra.mxu0 0.0
    %202 = vmatprep.subr.mxu0 0.0
    %203 = vmatpush1.msra.mxu0 0.0
    %204 = vmatprep.subr.mxu0 0.0
    %205 = vmatpush1.msra.mxu0 0.0
    %206 = vmatprep.subr.mxu0 0.0
    %207 = vmatpush1.msra.mxu0 0.0
    %208 = vmatprep.subr.mxu0 0.0
    %209 = vmatpush1.msra.mxu0 0.0
    %210 = vmatprep.subr.mxu0 0.0
    %211 = vmatpush1.msra.mxu0 0.0
    %212 = vmatprep.subr.mxu0 0.0
    %213 = vmatpush1.msra.mxu0 0.0
    %214 = vmatprep.subr.mxu0 0.0
    %215 = vmatpush1.msra.mxu0 0.0
    %216 = vmatprep.subr.mxu0 0.0
    %217 = vmatpush1.msra.mxu0 0.0
    %218 = vmatprep.subr.mxu0 0.0
    %219 = vmatpush1.msra.mxu0 0.0
    %220 = vmatprep.mubr.f32.mxu0 0.0
    %221 = vmatmul.mubr.f32.gmra.mrb[0].mxu0 %v149
    %v222 = vpop.f32.mrb[0].mxu0
    %v223 = vadd.f32 %v154, %v222
    %v224 = vpop.f32.mrb[0].mxu0
    %225 = vdwg.mxu0
    %v226 = vmax.f32 %v223, 0.0
    %vm227 = vcmp.lt.s32.totalorder %v27, 32
    %v228 = vsel %vm227, 1, 0
    %vm229 = vcmp.eq.s32.totalorder %v228, 1
    %v230 = vsel %vm229, %v226, 0.0
    %v232 = vrot.slane %v230, 6
    %233 = vrot.lane.b32.xlu0 %v232, 32
    %v234 = vpop.permute.xlu0 %233
    %v236 = vsel %vm148, %v123, %v234
    %v238 = vrot.slane %v236, 2
    %240 = vmatprep.subr.mxu0 0.0
    %241 = vmatpush1.msra.mxu0 %v131
    %242 = vmatprep.subr.mxu0 0.0
    %243 = vmatpush1.msra.mxu0 %v132
    %244 = vmatprep.subr.mxu0 0.0
    %245 = vmatpush1.msra.mxu0 %v133
    %246 = vmatprep.subr.mxu0 0.0
    %247 = vmatpush1.msra.mxu0 %v134
    %248 = vmatprep.subr.mxu0 0.0
    %249 = vmatpush1.msra.mxu0 %v135
    %250 = vmatprep.subr.mxu0 0.0
    %251 = vmatpush1.msra.mxu0 %v136
    %252 = vmatprep.subr.mxu0 0.0
    %253 = vmatpush1.msra.mxu0 %v137
    %254 = vmatprep.subr.mxu0 0.0
    %255 = vmatpush1.msra.mxu0 %v138
    %256 = vmatprep.subr.mxu0 0.0
    %257 = vmatpush1.msra.mxu0 %v139
    %258 = vmatprep.subr.mxu0 0.0
    %259 = vmatpush1.msra.mxu0 %v140
    %260 = vmatprep.subr.mxu0 0.0
    %261 = vmatpush1.msra.mxu0 %v141
    %262 = vmatprep.subr.mxu0 0.0
    %263 = vmatpush1.msra.mxu0 %v142
    %264 = vmatprep.subr.mxu0 0.0
    %265 = vmatpush1.msra.mxu0 %v143
    %266 = vmatprep.subr.mxu0 0.0
    %267 = vmatpush1.msra.mxu0 %v144
    %268 = vmatprep.subr.mxu0 0.0
    %269 = vmatpush1.msra.mxu0 %v145
    %270 = vmatprep.subr.mxu0 0.0
    %271 = vmatpush1.msra.mxu0 %v146
    %272 = vmatprep.subr.mxu0 0.0
    %273 = vmatpush1.msra.mxu0 0.0
    %274 = vmatprep.subr.mxu0 0.0
    %275 = vmatpush1.msra.mxu0 0.0
    %276 = vmatprep.subr.mxu0 0.0
    %277 = vmatpush1.msra.mxu0 0.0
    %278 = vmatprep.subr.mxu0 0.0
    %279 = vmatpush1.msra.mxu0 0.0
    %280 = vmatprep.subr.mxu0 0.0
    %281 = vmatpush1.msra.mxu0 0.0
    %282 = vmatprep.subr.mxu0 0.0
    %283 = vmatpush1.msra.mxu0 0.0
    %284 = vmatprep.subr.mxu0 0.0
    %285 = vmatpush1.msra.mxu0 0.0
    %286 = vmatprep.subr.mxu0 0.0
    %287 = vmatpush1.msra.mxu0 0.0
    %288 = vmatprep.subr.mxu0 0.0
    %289 = vmatpush1.msra.mxu0 0.0
    %290 = vmatprep.subr.mxu0 0.0
    %291 = vmatpush1.msra.mxu0 0.0
    %292 = vmatprep.subr.mxu0 0.0
    %293 = vmatpush1.msra.mxu0 0.0
    %294 = vmatprep.subr.mxu0 0.0
    %295 = vmatpush1.msra.mxu0 0.0
    %296 = vmatprep.subr.mxu0 0.0
    %297 = vmatpush1.msra.mxu0 0.0
    %298 = vmatprep.subr.mxu0 0.0
    %299 = vmatpush1.msra.mxu0 0.0
    %300 = vmatprep.subr.mxu0 0.0
    %301 = vmatpush1.msra.mxu0 0.0
    %302 = vmatprep.subr.mxu0 0.0
    %303 = vmatpush1.msra.mxu0 0.0
    %304 = vmatprep.mubr.f32.mxu0 0.0
    %305 = vmatmul.mubr.f32.gmra.mrb[0].mxu0 %v238
    %v306 = vpop.f32.mrb[0].mxu0
    %v307 = vadd.f32 %v154, %v306
    %v308 = vpop.f32.mrb[0].mxu0
    %309 = vdwg.mxu0
    %v310 = vmax.f32 %v307, 0.0
    %vm311 = vcmp.lt.s32.totalorder %v27, 64
    %v312 = vsel %vm311, 1, 0
    %vm313 = vcmp.eq.s32.totalorder %v312, 1
    %v314 = vsel %vm313, %v310, 0.0
    %v316 = vrot.slane %v314, 4
    %317 = vrot.lane.b32.xlu0 %v316, 32
    %v318 = vpop.permute.xlu0 %317
    %v320 = vsel %vm148, %v123, %v318
    %v322 = vrot.slane %v320, 4
    %324 = vmatprep.subr.mxu0 0.0
    %325 = vmatpush1.msra.mxu0 %v131
    %326 = vmatprep.subr.mxu0 0.0
    %327 = vmatpush1.msra.mxu0 %v132
    %328 = vmatprep.subr.mxu0 0.0
    %329 = vmatpush1.msra.mxu0 %v133
    %330 = vmatprep.subr.mxu0 0.0
    %331 = vmatpush1.msra.mxu0 %v134
    %332 = vmatprep.subr.mxu0 0.0
    %333 = vmatpush1.msra.mxu0 %v135
    %334 = vmatprep.subr.mxu0 0.0
    %335 = vmatpush1.msra.mxu0 %v136
    %336 = vmatprep.subr.mxu0 0.0
    %337 = vmatpush1.msra.mxu0 %v137
    %338 = vmatprep.subr.mxu0 0.0
    %339 = vmatpush1.msra.mxu0 %v138
    %340 = vmatprep.subr.mxu0 0.0
    %341 = vmatpush1.msra.mxu0 %v139
    %342 = vmatprep.subr.mxu0 0.0
    %343 = vmatpush1.msra.mxu0 %v140
    %344 = vmatprep.subr.mxu0 0.0
    %345 = vmatpush1.msra.mxu0 %v141
    %346 = vmatprep.subr.mxu0 0.0
    %347 = vmatpush1.msra.mxu0 %v142
    %348 = vmatprep.subr.mxu0 0.0
    %349 = vmatpush1.msra.mxu0 %v143
    %350 = vmatprep.subr.mxu0 0.0
    %351 = vmatpush1.msra.mxu0 %v144
    %352 = vmatprep.subr.mxu0 0.0
    %353 = vmatpush1.msra.mxu0 %v145
    %354 = vmatprep.subr.mxu0 0.0
    %355 = vmatpush1.msra.mxu0 %v146
    %356 = vmatprep.subr.mxu0 0.0
    %357 = vmatpush1.msra.mxu0 0.0
    %358 = vmatprep.subr.mxu0 0.0
    %359 = vmatpush1.msra.mxu0 0.0
    %360 = vmatprep.subr.mxu0 0.0
    %361 = vmatpush1.msra.mxu0 0.0
    %362 = vmatprep.subr.mxu0 0.0
    %363 = vmatpush1.msra.mxu0 0.0
    %364 = vmatprep.subr.mxu0 0.0
    %365 = vmatpush1.msra.mxu0 0.0
    %366 = vmatprep.subr.mxu0 0.0
    %367 = vmatpush1.msra.mxu0 0.0
    %368 = vmatprep.subr.mxu0 0.0
    %369 = vmatpush1.msra.mxu0 0.0
    %370 = vmatprep.subr.mxu0 0.0
    %371 = vmatpush1.msra.mxu0 0.0
    %372 = vmatprep.subr.mxu0 0.0
    %373 = vmatpush1.msra.mxu0 0.0
    %374 = vmatprep.subr.mxu0 0.0
    %375 = vmatpush1.msra.mxu0 0.0
    %376 = vmatprep.subr.mxu0 0.0
    %377 = vmatpush1.msra.mxu0 0.0
    %378 = vmatprep.subr.mxu0 0.0
    %379 = vmatpush1.msra.mxu0 0.0
    %380 = vmatprep.subr.mxu0 0.0
    %381 = vmatpush1.msra.mxu0 0.0
    %382 = vmatprep.subr.mxu0 0.0
    %383 = vmatpush1.msra.mxu0 0.0
    %384 = vmatprep.subr.mxu0 0.0
    %385 = vmatpush1.msra.mxu0 0.0
    %386 = vmatprep.subr.mxu0 0.0
    %387 = vmatpush1.msra.mxu0 0.0
    %388 = vmatprep.mubr.f32.mxu0 0.0
    %389 = vmatmul.mubr.f32.gmra.mrb[0].mxu0 %v322
    %v390 = vpop.f32.mrb[0].mxu0
    %v391 = vadd.f32 %v154, %v390
    %v392 = vpop.f32.mrb[0].mxu0
    %393 = vdwg.mxu0
    %v394 = vmax.f32 %v391, 0.0
    %v396 = vrot.slane %v394, 2
    %397 = vrot.lane.b32.xlu0 %v396, 32
    %v398 = vpop.permute.xlu0 %397
    %v400 = vsel %vm148, %v123, %v398
    %v402 = vrot.slane %v400, 6
    %404 = vmatprep.subr.mxu0 0.0
    %405 = vmatpush1.msra.mxu0 %v131
    %406 = vmatprep.subr.mxu0 0.0
    %407 = vmatpush1.msra.mxu0 %v132
    %408 = vmatprep.subr.mxu0 0.0
    %409 = vmatpush1.msra.mxu0 %v133
    %410 = vmatprep.subr.mxu0 0.0
    %411 = vmatpush1.msra.mxu0 %v134
    %412 = vmatprep.subr.mxu0 0.0
    %413 = vmatpush1.msra.mxu0 %v135
    %414 = vmatprep.subr.mxu0 0.0
    %415 = vmatpush1.msra.mxu0 %v136
    %416 = vmatprep.subr.mxu0 0.0
    %417 = vmatpush1.msra.mxu0 %v137
    %418 = vmatprep.subr.mxu0 0.0
    %419 = vmatpush1.msra.mxu0 %v138
    %420 = vmatprep.subr.mxu0 0.0
    %421 = vmatpush1.msra.mxu0 %v139
    %422 = vmatprep.subr.mxu0 0.0
    %423 = vmatpush1.msra.mxu0 %v140
    %424 = vmatprep.subr.mxu0 0.0
    %425 = vmatpush1.msra.mxu0 %v141
    %426 = vmatprep.subr.mxu0 0.0
    %427 = vmatpush1.msra.mxu0 %v142
    %428 = vmatprep.subr.mxu0 0.0
    %429 = vmatpush1.msra.mxu0 %v143
    %430 = vmatprep.subr.mxu0 0.0
    %431 = vmatpush1.msra.mxu0 %v144
    %432 = vmatprep.subr.mxu0 0.0
    %433 = vmatpush1.msra.mxu0 %v145
    %434 = vmatprep.subr.mxu0 0.0
    %435 = vmatpush1.msra.mxu0 %v146
    %436 = vmatprep.subr.mxu0 0.0
    %437 = vmatpush1.msra.mxu0 0.0
    %438 = vmatprep.subr.mxu0 0.0
    %439 = vmatpush1.msra.mxu0 0.0
    %440 = vmatprep.subr.mxu0 0.0
    %441 = vmatpush1.msra.mxu0 0.0
    %442 = vmatprep.subr.mxu0 0.0
    %443 = vmatpush1.msra.mxu0 0.0
    %444 = vmatprep.subr.mxu0 0.0
    %445 = vmatpush1.msra.mxu0 0.0
    %446 = vmatprep.subr.mxu0 0.0
    %447 = vmatpush1.msra.mxu0 0.0
    %448 = vmatprep.subr.mxu0 0.0
    %449 = vmatpush1.msra.mxu0 0.0
    %450 = vmatprep.subr.mxu0 0.0
    %451 = vmatpush1.msra.mxu0 0.0
    %452 = vmatprep.subr.mxu0 0.0
    %453 = vmatpush1.msra.mxu0 0.0
    %454 = vmatprep.subr.mxu0 0.0
    %455 = vmatpush1.msra.mxu0 0.0
    %456 = vmatprep.subr.mxu0 0.0
    %457 = vmatpush1.msra.mxu0 0.0
    %458 = vmatprep.subr.mxu0 0.0
    %459 = vmatpush1.msra.mxu0 0.0
    %460 = vmatprep.subr.mxu0 0.0
    %461 = vmatpush1.msra.mxu0 0.0
    %462 = vmatprep.subr.mxu0 0.0
    %463 = vmatpush1.msra.mxu0 0.0
    %464 = vmatprep.subr.mxu0 0.0
    %465 = vmatpush1.msra.mxu0 0.0
    %466 = vmatprep.subr.mxu0 0.0
    %467 = vmatpush1.msra.mxu0 0.0
    %468 = vmatprep.mubr.f32.mxu0 0.0
    %469 = vmatmul.mubr.f32.gmra.mrb[0].mxu0 %v402
    %v470 = vpop.f32.mrb[0].mxu0
    %v471 = vadd.f32 %v154, %v470
    %v472 = vpop.f32.mrb[0].mxu0
    %473 = vdwg.mxu0
    %v474 = vmax.f32 %v471, 0.0
    %476 = vrot.lane.b32.xlu0 %v474, 32
    %v477 = vpop.permute.xlu0 %476
    %v479 = vsel %vm148, %v128, %v477
    %480 = vmatprep.subr.mxu0 0.0
    %481 = vmatpush1.msra.mxu0 %v131
    %482 = vmatprep.subr.mxu0 0.0
    %483 = vmatpush1.msra.mxu0 %v132
    %484 = vmatprep.subr.mxu0 0.0
    %485 = vmatpush1.msra.mxu0 %v133
    %486 = vmatprep.subr.mxu0 0.0
    %487 = vmatpush1.msra.mxu0 %v134
    %488 = vmatprep.subr.mxu0 0.0
    %489 = vmatpush1.msra.mxu0 %v135
    %490 = vmatprep.subr.mxu0 0.0
    %491 = vmatpush1.msra.mxu0 %v136
    %492 = vmatprep.subr.mxu0 0.0
    %493 = vmatpush1.msra.mxu0 %v137
    %494 = vmatprep.subr.mxu0 0.0
    %495 = vmatpush1.msra.mxu0 %v138
    %496 = vmatprep.subr.mxu0 0.0
    %497 = vmatpush1.msra.mxu0 %v139
    %498 = vmatprep.subr.mxu0 0.0
    %499 = vmatpush1.msra.mxu0 %v140
    %500 = vmatprep.subr.mxu0 0.0
    %501 = vmatpush1.msra.mxu0 %v141
    %502 = vmatprep.subr.mxu0 0.0
    %503 = vmatpush1.msra.mxu0 %v142
    %504 = vmatprep.subr.mxu0 0.0
    %505 = vmatpush1.msra.mxu0 %v143
    %506 = vmatprep.subr.mxu0 0.0
    %507 = vmatpush1.msra.mxu0 %v144
    %508 = vmatprep.subr.mxu0 0.0
    %509 = vmatpush1.msra.mxu0 %v145
    %510 = vmatprep.subr.mxu0 0.0
    %511 = vmatpush1.msra.mxu0 %v146
    %512 = vmatprep.subr.mxu0 0.0
    %513 = vmatpush1.msra.mxu0 0.0
    %514 = vmatprep.subr.mxu0 0.0
    %515 = vmatpush1.msra.mxu0 0.0
    %516 = vmatprep.subr.mxu0 0.0
    %517 = vmatpush1.msra.mxu0 0.0
    %518 = vmatprep.subr.mxu0 0.0
    %519 = vmatpush1.msra.mxu0 0.0
    %520 = vmatprep.subr.mxu0 0.0
    %521 = vmatpush1.msra.mxu0 0.0
    %522 = vmatprep.subr.mxu0 0.0
    %523 = vmatpush1.msra.mxu0 0.0
    %524 = vmatprep.subr.mxu0 0.0
    %525 = vmatpush1.msra.mxu0 0.0
    %526 = vmatprep.subr.mxu0 0.0
    %527 = vmatpush1.msra.mxu0 0.0
    %528 = vmatprep.subr.mxu0 0.0
    %529 = vmatpush1.msra.mxu0 0.0
    %530 = vmatprep.subr.mxu0 0.0
    %531 = vmatpush1.msra.mxu0 0.0
    %532 = vmatprep.subr.mxu0 0.0
    %533 = vmatpush1.msra.mxu0 0.0
    %534 = vmatprep.subr.mxu0 0.0
    %535 = vmatpush1.msra.mxu0 0.0
    %536 = vmatprep.subr.mxu0 0.0
    %537 = vmatpush1.msra.mxu0 0.0
    %538 = vmatprep.subr.mxu0 0.0
    %539 = vmatpush1.msra.mxu0 0.0
    %540 = vmatprep.subr.mxu0 0.0
    %541 = vmatpush1.msra.mxu0 0.0
    %542 = vmatprep.subr.mxu0 0.0
    %543 = vmatpush1.msra.mxu0 0.0
    %544 = vmatprep.mubr.f32.mxu0 0.0
    %545 = vmatmul.mubr.f32.gmra.mrb[0].mxu0 %v479
    %v546 = vpop.f32.mrb[0].mxu0
    %v547 = vadd.f32 %v154, %v546
    %v548 = vpop.f32.mrb[0].mxu0
    %549 = vdwg.mxu0
    %v550 = vmax.f32 %v547, 0.0
    %v552 = vrot.slane %v550, 6
    %553 = vrot.lane.b32.xlu0 %v552, 32
    %v554 = vpop.permute.xlu0 %553
    %v556 = vsel %vm148, %v128, %v554
    %v558 = vrot.slane %v556, 2
    %560 = vmatprep.subr.mxu0 0.0
    %561 = vmatpush1.msra.mxu0 %v131
    %562 = vmatprep.subr.mxu0 0.0
    %563 = vmatpush1.msra.mxu0 %v132
    %564 = vmatprep.subr.mxu0 0.0
    %565 = vmatpush1.msra.mxu0 %v133
    %566 = vmatprep.subr.mxu0 0.0
    %567 = vmatpush1.msra.mxu0 %v134
    %568 = vmatprep.subr.mxu0 0.0
    %569 = vmatpush1.msra.mxu0 %v135
    %570 = vmatprep.subr.mxu0 0.0
    %571 = vmatpush1.msra.mxu0 %v136
    %572 = vmatprep.subr.mxu0 0.0
    %573 = vmatpush1.msra.mxu0 %v137
    %574 = vmatprep.subr.mxu0 0.0
    %575 = vmatpush1.msra.mxu0 %v138
    %576 = vmatprep.subr.mxu0 0.0
    %577 = vmatpush1.msra.mxu0 %v139
    %578 = vmatprep.subr.mxu0 0.0
    %579 = vmatpush1.msra.mxu0 %v140
    %580 = vmatprep.subr.mxu0 0.0
    %581 = vmatpush1.msra.mxu0 %v141
    %582 = vmatprep.subr.mxu0 0.0
    %583 = vmatpush1.msra.mxu0 %v142
    %584 = vmatprep.subr.mxu0 0.0
    %585 = vmatpush1.msra.mxu0 %v143
    %586 = vmatprep.subr.mxu0 0.0
    %587 = vmatpush1.msra.mxu0 %v144
    %588 = vmatprep.subr.mxu0 0.0
    %589 = vmatpush1.msra.mxu0 %v145
    %590 = vmatprep.subr.mxu0 0.0
    %591 = vmatpush1.msra.mxu0 %v146
    %592 = vmatprep.subr.mxu0 0.0
    %593 = vmatpush1.msra.mxu0 0.0
    %594 = vmatprep.subr.mxu0 0.0
    %595 = vmatpush1.msra.mxu0 0.0
    %596 = vmatprep.subr.mxu0 0.0
    %597 = vmatpush1.msra.mxu0 0.0
    %598 = vmatprep.subr.mxu0 0.0
    %599 = vmatpush1.msra.mxu0 0.0
    %600 = vmatprep.subr.mxu0 0.0
    %601 = vmatpush1.msra.mxu0 0.0
    %602 = vmatprep.subr.mxu0 0.0
    %603 = vmatpush1.msra.mxu0 0.0
    %604 = vmatprep.subr.mxu0 0.0
    %605 = vmatpush1.msra.mxu0 0.0
    %606 = vmatprep.subr.mxu0 0.0
    %607 = vmatpush1.msra.mxu0 0.0
    %608 = vmatprep.subr.mxu0 0.0
    %609 = vmatpush1.msra.mxu0 0.0
    %610 = vmatprep.subr.mxu0 0.0
    %611 = vmatpush1.msra.mxu0 0.0
    %612 = vmatprep.subr.mxu0 0.0
    %613 = vmatpush1.msra.mxu0 0.0
    %614 = vmatprep.subr.mxu0 0.0
    %615 = vmatpush1.msra.mxu0 0.0
    %616 = vmatprep.subr.mxu0 0.0
    %617 = vmatpush1.msra.mxu0 0.0
    %618 = vmatprep.subr.mxu0 0.0
    %619 = vmatpush1.msra.mxu0 0.0
    %620 = vmatprep.subr.mxu0 0.0
    %621 = vmatpush1.msra.mxu0 0.0
    %622 = vmatprep.subr.mxu0 0.0
    %623 = vmatpush1.msra.mxu0 0.0
    %624 = vmatprep.mubr.f32.mxu0 0.0
    %625 = vmatmul.mubr.f32.gmra.mrb[0].mxu0 %v558
    %v626 = vpop.f32.mrb[0].mxu0
    %v627 = vadd.f32 %v154, %v626
    %v628 = vpop.f32.mrb[0].mxu0
    %629 = vdwg.mxu0
    %v630 = vmax.f32 %v627, 0.0
    %v632 = vrot.slane %v630, 4
    %633 = vrot.lane.b32.xlu0 %v632, 32
    %v634 = vpop.permute.xlu0 %633
    %v636 = vsel %vm148, %v128, %v634
    %v638 = vrot.slane %v636, 4
    %640 = vmatprep.subr.mxu0 0.0
    %641 = vmatpush1.msra.mxu0 %v131
    %642 = vmatprep.subr.mxu0 0.0
    %643 = vmatpush1.msra.mxu0 %v132
    %644 = vmatprep.subr.mxu0 0.0
    %645 = vmatpush1.msra.mxu0 %v133
    %646 = vmatprep.subr.mxu0 0.0
    %647 = vmatpush1.msra.mxu0 %v134
    %648 = vmatprep.subr.mxu0 0.0
    %649 = vmatpush1.msra.mxu0 %v135
    %650 = vmatprep.subr.mxu0 0.0
    %651 = vmatpush1.msra.mxu0 %v136
    %652 = vmatprep.subr.mxu0 0.0
    %653 = vmatpush1.msra.mxu0 %v137
    %654 = vmatprep.subr.mxu0 0.0
    %655 = vmatpush1.msra.mxu0 %v138
    %656 = vmatprep.subr.mxu0 0.0
    %657 = vmatpush1.msra.mxu0 %v139
    %658 = vmatprep.subr.mxu0 0.0
    %659 = vmatpush1.msra.mxu0 %v140
    %660 = vmatprep.subr.mxu0 0.0
    %661 = vmatpush1.msra.mxu0 %v141
    %662 = vmatprep.subr.mxu0 0.0
    %663 = vmatpush1.msra.mxu0 %v142
    %664 = vmatprep.subr.mxu0 0.0
    %665 = vmatpush1.msra.mxu0 %v143
    %666 = vmatprep.subr.mxu0 0.0
    %667 = vmatpush1.msra.mxu0 %v144
    %668 = vmatprep.subr.mxu0 0.0
    %669 = vmatpush1.msra.mxu0 %v145
    %670 = vmatprep.subr.mxu0 0.0
    %671 = vmatpush1.msra.mxu0 %v146
    %672 = vmatprep.subr.mxu0 0.0
    %673 = vmatpush1.msra.mxu0 0.0
    %674 = vmatprep.subr.mxu0 0.0
    %675 = vmatpush1.msra.mxu0 0.0
    %676 = vmatprep.subr.mxu0 0.0
    %677 = vmatpush1.msra.mxu0 0.0
    %678 = vmatprep.subr.mxu0 0.0
    %679 = vmatpush1.msra.mxu0 0.0
    %680 = vmatprep.subr.mxu0 0.0
    %681 = vmatpush1.msra.mxu0 0.0
    %682 = vmatprep.subr.mxu0 0.0
    %683 = vmatpush1.msra.mxu0 0.0
    %684 = vmatprep.subr.mxu0 0.0
    %685 = vmatpush1.msra.mxu0 0.0
    %686 = vmatprep.subr.mxu0 0.0
    %687 = vmatpush1.msra.mxu0 0.0
    %688 = vmatprep.subr.mxu0 0.0
    %689 = vmatpush1.msra.mxu0 0.0
    %690 = vmatprep.subr.mxu0 0.0
    %691 = vmatpush1.msra.mxu0 0.0
    %692 = vmatprep.subr.mxu0 0.0
    %693 = vmatpush1.msra.mxu0 0.0
    %694 = vmatprep.subr.mxu0 0.0
    %695 = vmatpush1.msra.mxu0 0.0
    %696 = vmatprep.subr.mxu0 0.0
    %697 = vmatpush1.msra.mxu0 0.0
    %698 = vmatprep.subr.mxu0 0.0
    %699 = vmatpush1.msra.mxu0 0.0
    %700 = vmatprep.subr.mxu0 0.0
    %701 = vmatpush1.msra.mxu0 0.0
    %702 = vmatprep.subr.mxu0 0.0
    %703 = vmatpush1.msra.mxu0 0.0
    %704 = vmatprep.mubr.f32.mxu0 0.0
    %705 = vmatmul.mubr.f32.gmra.mrb[0].mxu0 %v638
    %v706 = vpop.f32.mrb[0].mxu0
    %v707 = vadd.f32 %v154, %v706
    %v708 = vpop.f32.mrb[0].mxu0
    %709 = vdwg.mxu0
    %v710 = vmax.f32 %v707, 0.0
    %v712 = vrot.slane %v710, 2
    %713 = vrot.lane.b32.xlu0 %v712, 32
    %v714 = vpop.permute.xlu0 %713
    %v716 = vsel %vm148, %v128, %v714
    %v718 = vrot.slane %v716, 6
    %720 = vmatprep.subr.mxu0 0.0
    %721 = vmatpush1.msra.mxu0 %v131
    %722 = vmatprep.subr.mxu0 0.0
    %723 = vmatpush1.msra.mxu0 %v132
    %724 = vmatprep.subr.mxu0 0.0
    %725 = vmatpush1.msra.mxu0 %v133
    %726 = vmatprep.subr.mxu0 0.0
    %727 = vmatpush1.msra.mxu0 %v134
    %728 = vmatprep.subr.mxu0 0.0
    %729 = vmatpush1.msra.mxu0 %v135
    %730 = vmatprep.subr.mxu0 0.0
    %731 = vmatpush1.msra.mxu0 %v136
    %732 = vmatprep.subr.mxu0 0.0
    %733 = vmatpush1.msra.mxu0 %v137
    %734 = vmatprep.subr.mxu0 0.0
    %735 = vmatpush1.msra.mxu0 %v138
    %736 = vmatprep.subr.mxu0 0.0
    %737 = vmatpush1.msra.mxu0 %v139
    %738 = vmatprep.subr.mxu0 0.0
    %739 = vmatpush1.msra.mxu0 %v140
    %740 = vmatprep.subr.mxu0 0.0
    %741 = vmatpush1.msra.mxu0 %v141
    %742 = vmatprep.subr.mxu0 0.0
    %743 = vmatpush1.msra.mxu0 %v142
    %744 = vmatprep.subr.mxu0 0.0
    %745 = vmatpush1.msra.mxu0 %v143
    %746 = vmatprep.subr.mxu0 0.0
    %747 = vmatpush1.msra.mxu0 %v144
    %748 = vmatprep.subr.mxu0 0.0
    %749 = vmatpush1.msra.mxu0 %v145
    %750 = vmatprep.subr.mxu0 0.0
    %751 = vmatpush1.msra.mxu0 %v146
    %752 = vmatprep.subr.mxu0 0.0
    %753 = vmatpush1.msra.mxu0 0.0
    %754 = vmatprep.subr.mxu0 0.0
    %755 = vmatpush1.msra.mxu0 0.0
    %756 = vmatprep.subr.mxu0 0.0
    %757 = vmatpush1.msra.mxu0 0.0
    %758 = vmatprep.subr.mxu0 0.0
    %759 = vmatpush1.msra.mxu0 0.0
    %760 = vmatprep.subr.mxu0 0.0
    %761 = vmatpush1.msra.mxu0 0.0
    %762 = vmatprep.subr.mxu0 0.0
    %763 = vmatpush1.msra.mxu0 0.0
    %764 = vmatprep.subr.mxu0 0.0
    %765 = vmatpush1.msra.mxu0 0.0
    %766 = vmatprep.subr.mxu0 0.0
    %767 = vmatpush1.msra.mxu0 0.0
    %768 = vmatprep.subr.mxu0 0.0
    %769 = vmatpush1.msra.mxu0 0.0
    %770 = vmatprep.subr.mxu0 0.0
    %771 = vmatpush1.msra.mxu0 0.0
    %772 = vmatprep.subr.mxu0 0.0
    %773 = vmatpush1.msra.mxu0 0.0
    %774 = vmatprep.subr.mxu0 0.0
    %775 = vmatpush1.msra.mxu0 0.0
    %776 = vmatprep.subr.mxu0 0.0
    %777 = vmatpush1.msra.mxu0 0.0
    %778 = vmatprep.subr.mxu0 0.0
    %779 = vmatpush1.msra.mxu0 0.0
    %780 = vmatprep.subr.mxu0 0.0
    %781 = vmatpush1.msra.mxu0 0.0
    %782 = vmatprep.subr.mxu0 0.0
    %783 = vmatpush1.msra.mxu0 0.0
    %784 = vmatprep.mubr.f32.mxu0 0.0
    %785 = vmatmul.mubr.f32.gmra.mrb[0].mxu0 %v718
    %v786 = vpop.f32.mrb[0].mxu0
    %v787 = vadd.f32 %v154, %v786
    %v788 = vpop.f32.mrb[0].mxu0
    %789 = vdwg.mxu0
    %v790 = vmax.f32 %v787, 0.0
    %792 = vrot.lane.b32.xlu0 %v790, 32
    %v793 = vpop.permute.xlu0 %792
    %v795 = vsel %vm148, 0.0, %v793
    %796 = vmatprep.subr.mxu0 0.0
    %797 = vmatpush1.msra.mxu0 %v131
    %798 = vmatprep.subr.mxu0 0.0
    %799 = vmatpush1.msra.mxu0 %v132
    %800 = vmatprep.subr.mxu0 0.0
    %801 = vmatpush1.msra.mxu0 %v133
    %802 = vmatprep.subr.mxu0 0.0
    %803 = vmatpush1.msra.mxu0 %v134
    %804 = vmatprep.subr.mxu0 0.0
    %805 = vmatpush1.msra.mxu0 %v135
    %806 = vmatprep.subr.mxu0 0.0
    %807 = vmatpush1.msra.mxu0 %v136
    %808 = vmatprep.subr.mxu0 0.0
    %809 = vmatpush1.msra.mxu0 %v137
    %810 = vmatprep.subr.mxu0 0.0
    %811 = vmatpush1.msra.mxu0 %v138
    %812 = vmatprep.subr.mxu0 0.0
    %813 = vmatpush1.msra.mxu0 %v139
    %814 = vmatprep.subr.mxu0 0.0
    %815 = vmatpush1.msra.mxu0 %v140
    %816 = vmatprep.subr.mxu0 0.0
    %817 = vmatpush1.msra.mxu0 %v141
    %818 = vmatprep.subr.mxu0 0.0
    %819 = vmatpush1.msra.mxu0 %v142
    %820 = vmatprep.subr.mxu0 0.0
    %821 = vmatpush1.msra.mxu0 %v143
    %822 = vmatprep.subr.mxu0 0.0
    %823 = vmatpush1.msra.mxu0 %v144
    %824 = vmatprep.subr.mxu0 0.0
    %825 = vmatpush1.msra.mxu0 %v145
    %826 = vmatprep.subr.mxu0 0.0
    %827 = vmatpush1.msra.mxu0 %v146
    %828 = vmatprep.subr.mxu0 0.0
    %829 = vmatpush1.msra.mxu0 0.0
    %830 = vmatprep.subr.mxu0 0.0
    %831 = vmatpush1.msra.mxu0 0.0
    %832 = vmatprep.subr.mxu0 0.0
    %833 = vmatpush1.msra.mxu0 0.0
    %834 = vmatprep.subr.mxu0 0.0
    %835 = vmatpush1.msra.mxu0 0.0
    %836 = vmatprep.subr.mxu0 0.0
    %837 = vmatpush1.msra.mxu0 0.0
    %838 = vmatprep.subr.mxu0 0.0
    %839 = vmatpush1.msra.mxu0 0.0
    %840 = vmatprep.subr.mxu0 0.0
    %841 = vmatpush1.msra.mxu0 0.0
    %842 = vmatprep.subr.mxu0 0.0
    %843 = vmatpush1.msra.mxu0 0.0
    %844 = vmatprep.subr.mxu0 0.0
    %845 = vmatpush1.msra.mxu0 0.0
    %846 = vmatprep.subr.mxu0 0.0
    %847 = vmatpush1.msra.mxu0 0.0
    %848 = vmatprep.subr.mxu0 0.0
    %849 = vmatpush1.msra.mxu0 0.0
    %850 = vmatprep.subr.mxu0 0.0
    %851 = vmatpush1.msra.mxu0 0.0
    %852 = vmatprep.subr.mxu0 0.0
    %853 = vmatpush1.msra.mxu0 0.0
    %854 = vmatprep.subr.mxu0 0.0
    %855 = vmatpush1.msra.mxu0 0.0
    %856 = vmatprep.subr.mxu0 0.0
    %857 = vmatpush1.msra.mxu0 0.0
    %858 = vmatprep.subr.mxu0 0.0
    %859 = vmatpush1.msra.mxu0 0.0
    %860 = vmatprep.mubr.f32.mxu0 0.0
    %861 = vmatmul.mubr.f32.gmra.mrb[0].mxu0 %v795
    %v862 = vpop.f32.mrb[0].mxu0
    %v863 = vadd.f32 %v154, %v862
    %v864 = vpop.f32.mrb[0].mxu0
    %865 = vdwg.mxu0
    %v866 = vmax.f32 %v863, 0.0
    %868 = vrot.lane.b32.xlu0 %v866, 32
    %v869 = vpop.permute.xlu0 %868
    %v871 = vsel %vm148, 0.0, %v869
    %872 = vmatprep.subr.mxu0 0.0
    %873 = vmatpush1.msra.mxu0 %v131
    %874 = vmatprep.subr.mxu0 0.0
    %875 = vmatpush1.msra.mxu0 %v132
    %876 = vmatprep.subr.mxu0 0.0
    %877 = vmatpush1.msra.mxu0 %v133
    %878 = vmatprep.subr.mxu0 0.0
    %879 = vmatpush1.msra.mxu0 %v134
    %880 = vmatprep.subr.mxu0 0.0
    %881 = vmatpush1.msra.mxu0 %v135
    %882 = vmatprep.subr.mxu0 0.0
    %883 = vmatpush1.msra.mxu0 %v136
    %884 = vmatprep.subr.mxu0 0.0
    %885 = vmatpush1.msra.mxu0 %v137
    %886 = vmatprep.subr.mxu0 0.0
    %887 = vmatpush1.msra.mxu0 %v138
    %888 = vmatprep.subr.mxu0 0.0
    %889 = vmatpush1.msra.mxu0 %v139
    %890 = vmatprep.subr.mxu0 0.0
    %891 = vmatpush1.msra.mxu0 %v140
    %892 = vmatprep.subr.mxu0 0.0
    %893 = vmatpush1.msra.mxu0 %v141
    %894 = vmatprep.subr.mxu0 0.0
    %895 = vmatpush1.msra.mxu0 %v142
    %896 = vmatprep.subr.mxu0 0.0
    %897 = vmatpush1.msra.mxu0 %v143
    %898 = vmatprep.subr.mxu0 0.0
    %899 = vmatpush1.msra.mxu0 %v144
    %900 = vmatprep.subr.mxu0 0.0
    %901 = vmatpush1.msra.mxu0 %v145
    %902 = vmatprep.subr.mxu0 0.0
    %903 = vmatpush1.msra.mxu0 %v146
    %904 = vmatprep.subr.mxu0 0.0
    %905 = vmatpush1.msra.mxu0 0.0
    %906 = vmatprep.subr.mxu0 0.0
    %907 = vmatpush1.msra.mxu0 0.0
    %908 = vmatprep.subr.mxu0 0.0
    %909 = vmatpush1.msra.mxu0 0.0
    %910 = vmatprep.subr.mxu0 0.0
    %911 = vmatpush1.msra.mxu0 0.0
    %912 = vmatprep.subr.mxu0 0.0
    %913 = vmatpush1.msra.mxu0 0.0
    %914 = vmatprep.subr.mxu0 0.0
    %915 = vmatpush1.msra.mxu0 0.0
    %916 = vmatprep.subr.mxu0 0.0
    %917 = vmatpush1.msra.mxu0 0.0
    %918 = vmatprep.subr.mxu0 0.0
    %919 = vmatpush1.msra.mxu0 0.0
    %920 = vmatprep.subr.mxu0 0.0
    %921 = vmatpush1.msra.mxu0 0.0
    %922 = vmatprep.subr.mxu0 0.0
    %923 = vmatpush1.msra.mxu0 0.0
    %924 = vmatprep.subr.mxu0 0.0
    %925 = vmatpush1.msra.mxu0 0.0
    %926 = vmatprep.subr.mxu0 0.0
    %927 = vmatpush1.msra.mxu0 0.0
    %928 = vmatprep.subr.mxu0 0.0
    %929 = vmatpush1.msra.mxu0 0.0
    %930 = vmatprep.subr.mxu0 0.0
    %931 = vmatpush1.msra.mxu0 0.0
    %932 = vmatprep.subr.mxu0 0.0
    %933 = vmatpush1.msra.mxu0 0.0
    %934 = vmatprep.subr.mxu0 0.0
    %935 = vmatpush1.msra.mxu0 0.0
    %936 = vmatprep.mubr.f32.mxu0 0.0
    %937 = vmatmul.mubr.f32.gmra.mrb[0].mxu0 %v871
    %v938 = vpop.f32.mrb[0].mxu0
    %v939 = vadd.f32 %v154, %v938
    %v940 = vpop.f32.mrb[0].mxu0
    %941 = vdwg.mxu0
    %v942 = vmax.f32 %v939, 0.0
    %v943 = vrot.slane %v474, 6
    %v945 = vrot.slane %v550, 4
    %v947 = vrot.slane %v630, 2
    %v949 = vrot.slane %v790, 6
    %v951 = vrot.slane %v866, 4
    %v954 = vrot.slane %v942, 2
    %vm956 = vcmask 1041408
    %v957 = vsel %vm956, %v394, %v943
    %vm958 = vcmask 1043456
    %v959 = vsel %vm958, %v957, %v945
    %vm960 = vcmask 1045504
    %v961 = vsel %vm960, %v959, %v947
    %v962 = vsel %vm956, %v710, %v949
    %v963 = vsel %vm958, %v962, %v951
    %v964 = vsel %vm960, %v963, %v954
    %v965 = vld [vmem:[%s4] sm:$0xff]
    %v966 = vld [vmem:[%s4 + $0x8] sm:$0xff]
    %v967 = vld [vmem:[%s4 + $0x10] sm:$0xff]
    %v968 = vld [vmem:[%s4 + $0x18] sm:$0xff]
    %v969 = vld [vmem:[%s5] sm:$0x1]
    %v971 = vlaneseq
    %v972 = vshrl.u32 %v971, 7
    %v973 = vsub.s32 0, %v972
    %v974 = vrot.slane %v969, %v973
    %978 = vrot.lane.b32.xlu0 %v961, 64
    %v979 = vpop.permute.xlu0 %978
    %980 = vrot.lane.b32.xlu0 %v964, 64
    %v981 = vpop.permute.xlu0 %980
    %v982 = vsel %vm148, %v979, 0
    %v984 = vsel %vm148, %v981, 0
    %986 = vmatprep.subr.mxu0 0.0
    %987 = vmatpush1.msra.mxu0 %v965
    %988 = vmatprep.subr.mxu0 0.0
    %989 = vmatpush1.msra.mxu0 %v966
    %990 = vmatprep.subr.mxu0 0.0
    %991 = vmatpush1.msra.mxu0 %v967
    %992 = vmatprep.subr.mxu0 0.0
    %993 = vmatpush1.msra.mxu0 %v968
    %994 = vmatprep.subr.mxu0 0.0
    %995 = vmatpush1.msra.mxu0 0.0
    %996 = vmatprep.subr.mxu0 0.0
    %997 = vmatpush1.msra.mxu0 0.0
    %998 = vmatprep.subr.mxu0 0.0
    %999 = vmatpush1.msra.mxu0 0.0
    %1000 = vmatprep.subr.mxu0 0.0
    %1001 = vmatpush1.msra.mxu0 0.0
    %1002 = vmatprep.subr.mxu0 0.0
    %1003 = vmatpush1.msra.mxu0 0.0
    %1004 = vmatprep.subr.mxu0 0.0
    %1005 = vmatpush1.msra.mxu0 0.0
    %1006 = vmatprep.subr.mxu0 0.0
    %1007 = vmatpush1.msra.mxu0 0.0
    %1008 = vmatprep.subr.mxu0 0.0
    %1009 = vmatpush1.msra.mxu0 0.0
    %1010 = vmatprep.subr.mxu0 0.0
    %1011 = vmatpush1.msra.mxu0 0.0
    %1012 = vmatprep.subr.mxu0 0.0
    %1013 = vmatpush1.msra.mxu0 0.0
    %1014 = vmatprep.subr.mxu0 0.0
    %1015 = vmatpush1.msra.mxu0 0.0
    %1016 = vmatprep.subr.mxu0 0.0
    %1017 = vmatpush1.msra.mxu0 0.0
    %1018 = vmatprep.subr.mxu0 0.0
    %1019 = vmatpush1.msra.mxu0 0.0
    %1020 = vmatprep.subr.mxu0 0.0
    %1021 = vmatpush1.msra.mxu0 0.0
    %1022 = vmatprep.subr.mxu0 0.0
    %1023 = vmatpush1.msra.mxu0 0.0
    %1024 = vmatprep.subr.mxu0 0.0
    %1025 = vmatpush1.msra.mxu0 0.0
    %1026 = vmatprep.subr.mxu0 0.0
    %1027 = vmatpush1.msra.mxu0 0.0
    %1028 = vmatprep.subr.mxu0 0.0
    %1029 = vmatpush1.msra.mxu0 0.0
    %1030 = vmatprep.subr.mxu0 0.0
    %1031 = vmatpush1.msra.mxu0 0.0
    %1032 = vmatprep.subr.mxu0 0.0
    %1033 = vmatpush1.msra.mxu0 0.0
    %1034 = vmatprep.subr.mxu0 0.0
    %1035 = vmatpush1.msra.mxu0 0.0
    %1036 = vmatprep.subr.mxu0 0.0
    %1037 = vmatpush1.msra.mxu0 0.0
    %1038 = vmatprep.subr.mxu0 0.0
    %1039 = vmatpush1.msra.mxu0 0.0
    %1040 = vmatprep.subr.mxu0 0.0
    %1041 = vmatpush1.msra.mxu0 0.0
    %1042 = vmatprep.subr.mxu0 0.0
    %1043 = vmatpush1.msra.mxu0 0.0
    %1044 = vmatprep.subr.mxu0 0.0
    %1045 = vmatpush1.msra.mxu0 0.0
    %1046 = vmatprep.subr.mxu0 0.0
    %1047 = vmatpush1.msra.mxu0 0.0
    %1048 = vmatprep.subr.mxu0 0.0
    %1049 = vmatpush1.msra.mxu0 0.0
    %1050 = vmatprep.mubr.f32.mxu0 0.0
    %1051 = vmatmul.mubr.f32.gmra.mrb[0].mxu0 %v982
    %v1052 = vpop.f32.mrb[0].mxu0
    %v1053 = vadd.f32 %v974, %v1052
    %v1054 = vpop.f32.mrb[0].mxu0
    %1055 = vmatprep.mubr.f32.mxu0 0.0
    %1056 = vmatmul.mubr.f32.gmra.mrb[0].mxu0 %v984
    %v1057 = vpop.f32.mrb[0].mxu0
    %v1058 = vadd.f32 %v974, %v1057
    %v1059 = vpop.f32.mrb[0].mxu0
    %1060 = vdwg.mxu0
    %1061 = vst [vmem:[#allocation2] sm:$0xff] %v1053
    %1062 = vst [vmem:[#allocation2 + $0x8] sm:$0xff] %v1058
    // Predicated region
    $region26: #{tpu_custom_call.1} parent=1 // pred_check
      _
    $region27: #{tpu_custom_call.1} parent=1 // pred_check_branch
      %1064 = sbr.rel (0) target = $region29
    $region28: #{tpu_custom_call.1} parent=1 // pred_region
      %s1066 = ssub.s32 256, 256
      %1067 = vsyncadd [#allocation3], %s1066
      %s1068 = sshll.u32 [#allocation2], 4
      %s1069 = int_to_ptr.vmem [resolvable:$true] %s1068
      %1074 = dma.vmem_to_hbm [thread:$0]  %s1069, 256, %s6, [#allocation3], 128, 128, 8
    $region29: #{tpu_custom_call.1} parent=1 // pred_fallthru
      _
    // Predicated region
    $region30: #{tpu_custom_call.1} parent=1 // pred_check
      _
    $region31: #{tpu_custom_call.1} parent=1 // pred_check_branch
      %1076 = sbr.rel (0) target = $region33
    $region32: #{tpu_custom_call.1} parent=1 // pred_region
      %1077 = dma.done [#allocation3], 256
    $region33: #{tpu_custom_call.1} parent=1 // pred_fallthru
      _
    %1078 = vsyncpa [#allocation3], 1

</llo_original>
